<compile_context>
chip_gen: v6e
topology: v6e:2x2x1
jax: 0.10.0
libtpu: 0.0.40
codegen_flags: <defaults>
</compile_context>

<pallas_src>
import functools

import jax
import jax.numpy as jnp
from jax.experimental import pallas as pl
from jax.experimental.pallas import tpu as pltpu

LN_EPS = 1e-5


def _res_block_kernel(x_ref, m_ref, b_ref, mup_ref, mdn_ref, *rest, norm):
    """One batch-block of Bblk images, rows packed as (Bblk*H, W*C).

    x_ref   : (M, LC)      f32 activation slab (M = Bblk*H, LC = W*C, lane-dense)
    m_ref   : (3, LC, LC)  bf16 block-Toeplitz conv weights, one slab per kernel row dy
    b_ref   : (1, LC)      f32 conv bias tiled over W
    mup_ref : (M, 1)       f32 0/1 mask: rows where the dy=0 (h-1) term is valid
    mdn_ref : (M, 1)       f32 0/1 mask: rows where the dy=2 (h+1) term is valid
    rest    : [avg_ref, g_ref, be_ref,] o_ref
    """
    if norm == "layer":
        avg_ref, g_ref, be_ref, o_ref = rest
    else:
        (o_ref,) = rest

    m_rows = x_ref.shape[0]
    x = x_ref[...]                                            # (M, LC) f32

    # Row-shifted copies for kernel rows dy=0 / dy=2.  pltpu.roll runs on the XLU
    # slot; the 0/1 masks zero rows whose shifted source crosses an image boundary
    # (this IS the zero padding in H -- no padded copy of x anywhere).
    x_up = pltpu.roll(x, shift=1, axis=0) * mup_ref[...]          # row r <- x[r-1]
    x_dn = pltpu.roll(x, shift=m_rows - 1, axis=0) * mdn_ref[...]  # row r <- x[r+1]

    # bf16 MXU inputs, f32 accumulation.
    xb = x.astype(jnp.bfloat16)
    x_up = x_up.astype(jnp.bfloat16)
    x_dn = x_dn.astype(jnp.bfloat16)

    # residual + conv bias, then the three conv-row matmuls (K = LC, lane-aligned)
    y = x + b_ref[...]
    y = y + jnp.dot(x_up, m_ref[0], preferred_element_type=jnp.float32)
    y = y + jnp.dot(xb, m_ref[1], preferred_element_type=jnp.float32)
    y = y + jnp.dot(x_dn, m_ref[2], preferred_element_type=jnp.float32)

    if norm == "layer":
        # Per-(h, w) LayerNorm over the C channels via a block-diagonal averaging
        # matmul (stays lane-dense, no cross-lane reshapes).  Two-pass variance
        # (mean of (y-mu)^2, clamped) avoids E[y^2]-E[y]^2 cancellation / NaNs.
        mu = jnp.dot(y, avg_ref[...], preferred_element_type=jnp.float32)
        d = y - mu
        var = jnp.dot(d * d, avg_ref[...], preferred_element_type=jnp.float32)
        var = jnp.maximum(var, 0.0)
        y = d * jax.lax.rsqrt(var + LN_EPS) * g_ref[...] + be_ref[...]

    o_ref[...] = jnp.maximum(y, 0.0)  # ReLU


def _pick_bblk(B, H):
    """Images per grid step: target ~256 matmul rows, prefer >=2 steps if M stays >=128."""
    cap = max(1, 256 // max(H, 1))
    bblk = 1
    for d in range(1, B + 1):
        if B % d == 0 and d <= cap:
            bblk = d
    if B // bblk < 2:                      # v7x: 2 TensorCores want >=2 parallel steps
        for d in range(bblk - 1, 0, -1):
            if B % d == 0 and d * H >= 128:
                bblk = d
                break
    if (bblk * H) % 8 != 0:                # keep the sublane dim 8-aligned, or use full extent
        bblk = B
    return bblk


def res_block_2d(x, conv_w, conv_b, *, norm="none", ln_gamma=None, ln_beta=None):
    """x: (B, C, H, W) NCHW (PyTorch layout); conv_w: (Cout, Cin, 3, 3); conv_b: (Cout,)."""
    B, C, H, W = x.shape
    Cout, Cin, KH, KW = conv_w.shape
    if (KH, KW) != (3, 3) or Cin != C or Cout != C:
        raise ValueError("res_block_2D residual path requires dim_in == dim_out and ks=3")
    if norm not in ("none", "layer"):
        # TODO(synk): norm='batch' (nn.BatchNorm2d) not implemented.
        raise NotImplementedError(f"norm={norm!r} not supported")

    LC = W * C                      # packed lane width; fastest when LC % 128 == 0
    bblk = _pick_bblk(B, H)
    mrows = bblk * H
    grid = (B // bblk,)

    # --- activation: channels-last, packed (B*H, W*C); the ONLY HBM copy of x ---
    # (the NCHW<->packed transpose is an XLA op outside the kernel; a channels-last
    #  pipeline would remove it entirely)
    x2 = jnp.transpose(x.astype(jnp.float32), (0, 2, 3, 1)).reshape(B * H, LC)

    # --- per-weight constants (cheap; hoistable/cacheable per weight update) ---
    w_hwio = jnp.transpose(conv_w.astype(jnp.float32), (2, 3, 1, 0))        # (3,3,Cin,Cout)
    # Block-Toeplitz slabs restricted to VALID input columns (W zero padding is implicit):
    #   Mslab[dy][wi*C+ci, wo*C+co] = w[co, ci, dy, wi-wo+1]  when |wi-wo| <= 1
    P = (jnp.arange(W)[None, :, None]
         == (jnp.arange(W)[None, None, :] + jnp.arange(3)[:, None, None] - 1)
         ).astype(jnp.float32)                                              # (3, W, W)
    Mslab = jnp.einsum("xiw,yxco->yicwo", P, w_hwio).reshape(3, LC, LC)
    Mslab = Mslab.astype(jnp.bfloat16)                                      # bf16 MXU weights
    bias2 = jnp.tile(conv_b.astype(jnp.float32).reshape(1, Cout), (1, W))   # (1, LC)

    # 0/1 row masks implementing the H zero padding for the shifted (dy=0 / dy=2) terms
    hh = jnp.arange(mrows) % H
    mask_up = (hh > 0).astype(jnp.float32).reshape(mrows, 1)
    mask_dn = (hh < H - 1).astype(jnp.float32).reshape(mrows, 1)

    inputs = [x2, Mslab, bias2, mask_up, mask_dn]
    in_specs = [
        pl.BlockSpec((mrows, LC), lambda i: (i, 0)),
        pl.BlockSpec((3, LC, LC), lambda i: (0, 0, 0)),
        pl.BlockSpec((1, LC), lambda i: (0, 0)),
        pl.BlockSpec((mrows, 1), lambda i: (0, 0)),
        pl.BlockSpec((mrows, 1), lambda i: (0, 0)),
    ]

    if norm == "layer":
        grp = jnp.arange(LC) // Cout
        avg = (grp[:, None] == grp[None, :]).astype(jnp.float32) / Cout     # (LC, LC)
        gamma2 = jnp.tile(ln_gamma.astype(jnp.float32).reshape(1, Cout), (1, W))
        beta2 = jnp.tile(ln_beta.astype(jnp.float32).reshape(1, Cout), (1, W))
        inputs += [avg, gamma2, beta2]
        in_specs += [
            pl.BlockSpec((LC, LC), lambda i: (0, 0)),
            pl.BlockSpec((1, LC), lambda i: (0, 0)),
            pl.BlockSpec((1, LC), lambda i: (0, 0)),
        ]

    out = pl.pallas_call(
        functools.partial(_res_block_kernel, norm=norm),
        grid=grid,
        in_specs=in_specs,
        out_specs=pl.BlockSpec((mrows, LC), lambda i: (i, 0)),
        out_shape=jax.ShapeDtypeStruct((B * H, LC), jnp.float32),
        compiler_params=pltpu.CompilerParams(dimension_semantics=("parallel",)),
    )(*inputs)

    return jnp.transpose(out.reshape(B, H, W, Cout), (0, 3, 1, 2))          # back to NCHW


# ---------------- pure-JAX reference (for the correctness check) ----------------
def ref_res_block(x, conv_w, conv_b, *, norm="none", ln_gamma=None, ln_beta=None):
    y = jax.lax.conv_general_dilated(
        x, conv_w, window_strides=(1, 1), padding=((1, 1), (1, 1)),
        dimension_numbers=("NCHW", "OIHW", "NCHW"),
        precision=jax.lax.Precision.HIGHEST)
    y = x + y + conv_b[None, :, None, None]
    if norm == "layer":
        mu = jnp.mean(y, axis=1, keepdims=True)
        var = jnp.mean((y - mu) ** 2, axis=1, keepdims=True)
        y = (y - mu) / jnp.sqrt(var + LN_EPS)
        y = y * ln_gamma[None, :, None, None] + ln_beta[None, :, None, None]
    return jnp.maximum(y, 0.0)


if __name__ == "__main__":
    key = jax.random.PRNGKey(0)
    k_x, k_w, k_b, k_g, k_be = jax.random.split(key, 5)

    B, C, H, W = 2, 8, 16, 16          # residual requires dim_in == dim_out; W*C = 128
    x = jax.random.normal(k_x, (B, C, H, W), jnp.float32)
    conv_w = 0.1 * jax.random.normal(k_w, (C, C, 3, 3), jnp.float32)
    conv_b = 0.1 * jax.random.normal(k_b, (C,), jnp.float32)

    # default constructor: norm='none'
    fwd = jax.jit(functools.partial(res_block_2d, norm="none"))
    y = jax.block_until_ready(fwd(x, conv_w, conv_b))
    y_ref = ref_res_block(x, conv_w, conv_b)
    assert y.shape == x.shape and y.dtype == jnp.float32
    assert bool(jnp.all(jnp.isfinite(y)))
    # bf16 MXU inputs with f32 accumulation -> tolerance widened vs. pure-f32 math
    assert jnp.allclose(y, y_ref, atol=2e-2, rtol=2e-2), \
        float(jnp.max(jnp.abs(y - y_ref)))

    # optional norm='layer' variant
    ln_gamma = 1.0 + 0.1 * jax.random.normal(k_g, (C,), jnp.float32)
    ln_beta = 0.1 * jax.random.normal(k_be, (C,), jnp.float32)
    fwd_ln = jax.jit(functools.partial(res_block_2d, norm="layer"))
    y_ln = jax.block_until_ready(
        fwd_ln(x, conv_w, conv_b, ln_gamma=ln_gamma, ln_beta=ln_beta))
    y_ln_ref = ref_res_block(x, conv_w, conv_b, norm="layer",
                             ln_gamma=ln_gamma, ln_beta=ln_beta)
    assert bool(jnp.all(jnp.isfinite(y_ln)))
    assert jnp.allclose(y_ln, y_ln_ref, atol=3e-2, rtol=3e-2), \
        float(jnp.max(jnp.abs(y_ln - y_ln_ref)))

    print("KERNEL_OK")
</pallas_src>

<mosaic_0001>
module attributes {stable_mosaic.version = 11 : i64} {
  func.func @_res_block_kernel(%arg0: i32, %arg1: memref<32x128xf32, #tpu.memory_space<vmem>>, %arg2: memref<3x128x128xbf16, #tpu.memory_space<vmem>>, %arg3: memref<1x128xf32, #tpu.memory_space<vmem>>, %arg4: memref<32x1xf32, #tpu.memory_space<vmem>>, %arg5: memref<32x1xf32, #tpu.memory_space<vmem>>, %arg6: memref<32x128xf32, #tpu.memory_space<vmem>>) attributes {dimension_semantics = [#tpu.dimension_semantics<parallel>], iteration_bounds = array<i64: 1>, scalar_prefetch = 0 : i64, scratch_operands = 0 : i64, tpu.core_type = #tpu.core_type<tc>, window_params = [{transform_indices = @transform_0, window_bounds = array<i64: 32, 128>}, {pipeline_mode = #tpu.pipeline_mode<synchronous>, transform_indices = @transform_1, window_bounds = array<i64: 3, 128, 128>}, {pipeline_mode = #tpu.pipeline_mode<synchronous>, transform_indices = @transform_2, window_bounds = array<i64: 1, 128>}, {pipeline_mode = #tpu.pipeline_mode<synchronous>, transform_indices = @transform_3, window_bounds = array<i64: 32, 1>}, {pipeline_mode = #tpu.pipeline_mode<synchronous>, transform_indices = @transform_4, window_bounds = array<i64: 32, 1>}, {transform_indices = @transform_5, window_bounds = array<i64: 32, 128>}]} {
    %c0 = arith.constant 0 : index
    %c0_0 = arith.constant 0 : index
    %0 = vector.load %arg1[%c0, %c0_0] : memref<32x128xf32, #tpu.memory_space<vmem>>, vector<32x128xf32>
    %c1_i32 = arith.constant 1 : i32
    %1 = tpu.dynamic_rotate %0 by %c1_i32 dim 0 : vector<32x128xf32>, i32 -> vector<32x128xf32>
    %c0_1 = arith.constant 0 : index
    %c0_2 = arith.constant 0 : index
    %2 = vector.load %arg4[%c0_1, %c0_2] : memref<32x1xf32, #tpu.memory_space<vmem>>, vector<32x1xf32>
    %3 = vector.broadcast %2 : vector<32x1xf32> to vector<32x128xf32>
    %4 = arith.mulf %1, %3 : vector<32x128xf32>
    %c31_i32 = arith.constant 31 : i32
    %5 = tpu.dynamic_rotate %0 by %c31_i32 dim 0 : vector<32x128xf32>, i32 -> vector<32x128xf32>
    %c0_3 = arith.constant 0 : index
    %c0_4 = arith.constant 0 : index
    %6 = vector.load %arg5[%c0_3, %c0_4] : memref<32x1xf32, #tpu.memory_space<vmem>>, vector<32x1xf32>
    %7 = vector.broadcast %6 : vector<32x1xf32> to vector<32x128xf32>
    %8 = arith.mulf %5, %7 : vector<32x128xf32>
    %9 = arith.truncf %0 : vector<32x128xf32> to vector<32x128xbf16>
    %10 = arith.truncf %4 : vector<32x128xf32> to vector<32x128xbf16>
    %11 = arith.truncf %8 : vector<32x128xf32> to vector<32x128xbf16>
    %c0_5 = arith.constant 0 : index
    %c0_6 = arith.constant 0 : index
    %12 = vector.load %arg3[%c0_5, %c0_6] : memref<1x128xf32, #tpu.memory_space<vmem>>, vector<1x128xf32>
    %13 = vector.broadcast %12 : vector<1x128xf32> to vector<32x128xf32>
    %14 = arith.addf %0, %13 : vector<32x128xf32>
    %c0_7 = arith.constant 0 : index
    %c0_8 = arith.constant 0 : index
    %c0_9 = arith.constant 0 : index
    %15 = vector.load %arg2[%c0_7, %c0_8, %c0_9] : memref<3x128x128xbf16, #tpu.memory_space<vmem>>, vector<1x128x128xbf16>
    %16 = vector.shape_cast %15 : vector<1x128x128xbf16> to vector<128x128xbf16>
    %cst = arith.constant dense<0.000000e+00> : vector<32x128xf32>
    %17 = tpu.matmul %10, %16, %cst {dimension_numbers = #tpu.dot_dimension_numbers<[1], [0], [0], [1], [0, 0, 1, 1], [], []>} : vector<32x128xbf16>, vector<128x128xbf16>, vector<32x128xf32> -> vector<32x128xf32>
    %18 = arith.addf %14, %17 : vector<32x128xf32>
    %c1 = arith.constant 1 : index
    %c0_10 = arith.constant 0 : index
    %c0_11 = arith.constant 0 : index
    %19 = vector.load %arg2[%c1, %c0_10, %c0_11] : memref<3x128x128xbf16, #tpu.memory_space<vmem>>, vector<1x128x128xbf16>
    %20 = vector.shape_cast %19 : vector<1x128x128xbf16> to vector<128x128xbf16>
    %cst_12 = arith.constant dense<0.000000e+00> : vector<32x128xf32>
    %21 = tpu.matmul %9, %20, %cst_12 {dimension_numbers = #tpu.dot_dimension_numbers<[1], [0], [0], [1], [0, 0, 1, 1], [], []>} : vector<32x128xbf16>, vector<128x128xbf16>, vector<32x128xf32> -> vector<32x128xf32>
    %22 = arith.addf %18, %21 : vector<32x128xf32>
    %c2 = arith.constant 2 : index
    %c0_13 = arith.constant 0 : index
    %c0_14 = arith.constant 0 : index
    %23 = vector.load %arg2[%c2, %c0_13, %c0_14] : memref<3x128x128xbf16, #tpu.memory_space<vmem>>, vector<1x128x128xbf16>
    %24 = vector.shape_cast %23 : vector<1x128x128xbf16> to vector<128x128xbf16>
    %cst_15 = arith.constant dense<0.000000e+00> : vector<32x128xf32>
    %25 = tpu.matmul %11, %24, %cst_15 {dimension_numbers = #tpu.dot_dimension_numbers<[1], [0], [0], [1], [0, 0, 1, 1], [], []>} : vector<32x128xbf16>, vector<128x128xbf16>, vector<32x128xf32> -> vector<32x128xf32>
    %26 = arith.addf %22, %25 : vector<32x128xf32>
    %cst_16 = arith.constant 0.000000e+00 : f32
    %27 = vector.broadcast %cst_16 : f32 to vector<32x128xf32>
    %28 = arith.maximumf %26, %27 : vector<32x128xf32>
    %c0_17 = arith.constant 0 : index
    %c0_18 = arith.constant 0 : index
    %29 = vector.load %arg6[%c0_17, %c0_18] : memref<32x128xf32, #tpu.memory_space<vmem>>, vector<32x128xf32>
    tpu.vector_store %arg6[%c0_17, %c0_18], %28 {strides = array<i32>} : memref<32x128xf32, #tpu.memory_space<vmem>>, vector<32x128xf32>,
    return
  }
  func.func @transform_0(%arg0: i32) -> (i32, i32) {
    %c0_i32 = arith.constant 0 : i32
    %c0_i32_0 = arith.constant 0 : i32
    return %arg0, %c0_i32 : i32, i32
  }
  func.func @transform_1(%arg0: i32) -> (i32, i32, i32) {
    %c0_i32 = arith.constant 0 : i32
    %c0_i32_0 = arith.constant 0 : i32
    %c0_i32_1 = arith.constant 0 : i32
    %c0_i32_2 = arith.constant 0 : i32
    return %c0_i32, %c0_i32_0, %c0_i32_1 : i32, i32, i32
  }
  func.func @transform_2(%arg0: i32) -> (i32, i32) {
    %c0_i32 = arith.constant 0 : i32
    %c0_i32_0 = arith.constant 0 : i32
    %c0_i32_1 = arith.constant 0 : i32
    return %c0_i32, %c0_i32_0 : i32, i32
  }
  func.func @transform_3(%arg0: i32) -> (i32, i32) {
    %c0_i32 = arith.constant 0 : i32
    %c0_i32_0 = arith.constant 0 : i32
    %c0_i32_1 = arith.constant 0 : i32
    return %c0_i32, %c0_i32_0 : i32, i32
  }
  func.func @transform_4(%arg0: i32) -> (i32, i32) {
    %c0_i32 = arith.constant 0 : i32
    %c0_i32_0 = arith.constant 0 : i32
    %c0_i32_1 = arith.constant 0 : i32
    return %c0_i32, %c0_i32_0 : i32, i32
  }
  func.func @transform_5(%arg0: i32) -> (i32, i32) {
    %c0_i32 = arith.constant 0 : i32
    %c0_i32_0 = arith.constant 0 : i32
    return %arg0, %c0_i32 : i32, i32
  }
}

</mosaic_0001>

<llo_original>
// kernel: res_block_2d.1
$region0: #{res_block_2d.1}
  #allocation0 [shape = 'u32[]', space=smem, size = 0x4, offset = 0x4, fixed_abs, tag = 'smem constant byte address 0x4 - core index']
  #allocation1 [shape = 'u32[144,128]{1,0:T(1,128)}', space=vmem, size = 0x12000, scoped, tag = 'internal scratch']
  %s0 = inlined_call_operand.vmem [shape: f32[32,128], index: 0, kind: input, shape index: {}]
  %s1 = inlined_call_operand.vmem [shape: bf16[3,128,128], index: 1, kind: input, shape index: {}]
  %s2 = inlined_call_operand.vmem [shape: f32[1,128], index: 2, kind: input, shape index: {}]
  %s3 = inlined_call_operand.vmem [shape: f32[32,1], index: 3, kind: input, shape index: {}]
  %s4 = inlined_call_operand.vmem [shape: f32[32,1], index: 4, kind: input, shape index: {}]
  %s5 = inlined_call_operand.vmem [shape: f32[32,128], index: 5, kind: output, shape index: {}]
  %s6 = sld [smem:[#allocation0]]
  $region30: #{res_block_2d.1} parent=0
    _
  %s8 = ssub.s32 1, %s6
  %s9 = scalar_select 0, %s8, %s6
  // Predicated region
  $region2: #{res_block_2d.1} parent=0 // pred_check
    _
  $region3: #{res_block_2d.1} parent=0 // pred_check_branch
    %11 = sbr.rel (0) target = $region5
  $region4: #{res_block_2d.1} parent=0 // pred_region
    _
  $region5: #{res_block_2d.1} parent=0 // pred_fallthru
    _
  // Predicated region
  $region6: #{res_block_2d.1} parent=0 // pred_check
    _
  $region7: #{res_block_2d.1} parent=0 // pred_check_branch
    %13 = sbr.rel (0) target = $region9
  $region8: #{res_block_2d.1} parent=0 // pred_region
    _
  $region9: #{res_block_2d.1} parent=0 // pred_fallthru
    _
  // Predicated region
  $region10: #{res_block_2d.1} parent=0 // pred_check
    _
  $region11: #{res_block_2d.1} parent=0 // pred_check_branch
    %15 = sbr.rel (0) target = $region13
  $region12: #{res_block_2d.1} parent=0 // pred_region
    _
  $region13: #{res_block_2d.1} parent=0 // pred_fallthru
    _
  // Predicated region
  $region14: #{res_block_2d.1} parent=0 // pred_check
    _
  $region15: #{res_block_2d.1} parent=0 // pred_check_branch
    %17 = sbr.rel (0) target = $region17
  $region16: #{res_block_2d.1} parent=0 // pred_region
    _
  $region17: #{res_block_2d.1} parent=0 // pred_fallthru
    _
  // Predicated region
  $region18: #{res_block_2d.1} parent=0 // pred_check
    _
  $region19: #{res_block_2d.1} parent=0 // pred_check_branch
    %19 = sbr.rel (0) target = $region21
  $region20: #{res_block_2d.1} parent=0 // pred_region
    _
  $region21: #{res_block_2d.1} parent=0 // pred_fallthru
    _
  %v21 = vld [vmem:[%s0] sm:$0xff]
  %v22 = vld [vmem:[%s0 + $0x8] sm:$0xff]
  %v23 = vld [vmem:[%s0 + $0x10] sm:$0xff]
  %v24 = vld [vmem:[%s0 + $0x18] sm:$0xff]
  %v25 = vrot.slane %v21, 7
  %v26 = vrot.slane %v22, 7
  %v27 = vrot.slane %v23, 7
  %v28 = vrot.slane %v24, 7
  %v29 = vlaneseq
  %v30 = vshrl.u32 %v29, 7
  %vm31 = vcmp.lt.s32.totalorder %v30, 1
  %v32 = vsel %vm31, %v27, %v28
  %v33 = vsel %vm31, %v26, %v27
  %v34 = vsel %vm31, %v25, %v26
  %v35 = vsel %vm31, %v28, %v25
  %v36 = vld [vmem:[%s3] sm:$0xff]
  %v37 = vld [vmem:[%s3 + $0x8] sm:$0xff]
  %v38 = vld [vmem:[%s3 + $0x10] sm:$0xff]
  %v39 = vld [vmem:[%s3 + $0x18] sm:$0xff]
  %41 = vset.pattern.permute.xlu0 0
  %42 = vperm.xlu0 %41, %v36
  %v43 = vpop.permute.xlu0 %42
  %46 = vset.pattern.permute.xlu0 0
  %47 = vperm.xlu0 %46, %v37
  %v48 = vpop.permute.xlu0 %47
  %51 = vset.pattern.permute.xlu0 0
  %52 = vperm.xlu0 %51, %v38
  %v53 = vpop.permute.xlu0 %52
  %56 = vset.pattern.permute.xlu0 0
  %57 = vperm.xlu0 %56, %v39
  %v58 = vpop.permute.xlu0 %57
  %v60 = vmul.f32 %v35, %v43
  %v61 = vmul.f32 %v34, %v48
  %v62 = vmul.f32 %v33, %v53
  %v63 = vmul.f32 %v32, %v58
  %v64 = vrot.slane %v21, 1
  %v65 = vrot.slane %v22, 1
  %v66 = vrot.slane %v23, 1
  %v67 = vrot.slane %v24, 1
  %vm68 = vcmp.lt.s32.totalorder %v30, 7
  %v69 = vsel %vm68, %v66, %v67
  %v70 = vsel %vm68, %v65, %v66
  %v71 = vsel %vm68, %v64, %v65
  %v72 = vsel %vm68, %v67, %v64
  %v73 = vld [vmem:[%s4] sm:$0xff]
  %v74 = vld [vmem:[%s4 + $0x8] sm:$0xff]
  %v75 = vld [vmem:[%s4 + $0x10] sm:$0xff]
  %v76 = vld [vmem:[%s4 + $0x18] sm:$0xff]
  %78 = vset.pattern.permute.xlu0 0
  %79 = vperm.xlu0 %78, %v73
  %v80 = vpop.permute.xlu0 %79
  %83 = vset.pattern.permute.xlu0 0
  %84 = vperm.xlu0 %83, %v74
  %v85 = vpop.permute.xlu0 %84
  %88 = vset.pattern.permute.xlu0 0
  %89 = vperm.xlu0 %88, %v75
  %v90 = vpop.permute.xlu0 %89
  %93 = vset.pattern.permute.xlu0 0
  %94 = vperm.xlu0 %93, %v76
  %v95 = vpop.permute.xlu0 %94
  %v97 = vmul.f32 %v71, %v80
  %v98 = vmul.f32 %v70, %v85
  %v99 = vmul.f32 %v69, %v90
  %v100 = vmul.f32 %v72, %v95
  %v101 = vpack.c.bf16 %v22, %v21
  %v102 = vpack.c.bf16 %v24, %v23
  %v103 = vpack.c.bf16 %v61, %v60
  %v104 = vpack.c.bf16 %v63, %v62
  %v105 = vpack.c.bf16 %v98, %v97
  %v106 = vpack.c.bf16 %v100, %v99
  %v107 = vld [vmem:[%s2] sm:$0x1]
  %v109 = vlaneseq
  %v110 = vshrl.u32 %v109, 7
  %v111 = vsub.s32 0, %v110
  %v112 = vrot.slane %v107, %v111
  %v114 = vadd.f32 %v21, %v112
  %v115 = vadd.f32 %v22, %v112
  %v116 = vadd.f32 %v23, %v112
  %v117 = vadd.f32 %v24, %v112
  %v118 = vld [vmem:[%s1] sm:$0xf]
  %v119 = vld [vmem:[%s1 + $0x4] sm:$0xf]
  %v120 = vld [vmem:[%s1 + $0x8] sm:$0xf]
  %v121 = vld [vmem:[%s1 + $0xc] sm:$0xf]
  %v122 = vld [vmem:[%s1 + $0x10] sm:$0xf]
  %v123 = vld [vmem:[%s1 + $0x14] sm:$0xf]
  %v124 = vld [vmem:[%s1 + $0x18] sm:$0xf]
  %v125 = vld [vmem:[%s1 + $0x1c] sm:$0xf]
  %v126 = vld [vmem:[%s1 + $0x20] sm:$0xf]
  %v127 = vld [vmem:[%s1 + $0x24] sm:$0xf]
  %v128 = vld [vmem:[%s1 + $0x28] sm:$0xf]
  %v129 = vld [vmem:[%s1 + $0x2c] sm:$0xf]
  %v130 = vld [vmem:[%s1 + $0x30] sm:$0xf]
  %v131 = vld [vmem:[%s1 + $0x34] sm:$0xf]
  %v132 = vld [vmem:[%s1 + $0x38] sm:$0xf]
  %v133 = vld [vmem:[%s1 + $0x3c] sm:$0xf]
  %v150 = vunpack.c.l.b16 %v118
  %v151 = vunpack.c.l.b16 %v119
  %v152 = vunpack.c.l.b16 %v120
  %v153 = vunpack.c.l.b16 %v121
  %v154 = vunpack.c.l.b16 %v122
  %v155 = vunpack.c.l.b16 %v123
  %v156 = vunpack.c.l.b16 %v124
  %v157 = vunpack.c.l.b16 %v125
  %v158 = vunpack.c.l.b16 %v126
  %v159 = vunpack.c.l.b16 %v127
  %v160 = vunpack.c.l.b16 %v128
  %v161 = vunpack.c.l.b16 %v129
  %v162 = vunpack.c.l.b16 %v130
  %v163 = vunpack.c.l.b16 %v131
  %v164 = vunpack.c.l.b16 %v132
  %v165 = vunpack.c.l.b16 %v133
  %v166 = vpack.c.b16 %v151, %v150
  %v167 = vpack.c.b16 %v153, %v152
  %v168 = vpack.c.b16 %v155, %v154
  %v169 = vpack.c.b16 %v157, %v156
  %v170 = vpack.c.b16 %v159, %v158
  %v171 = vpack.c.b16 %v161, %v160
  %v172 = vpack.c.b16 %v163, %v162
  %v173 = vpack.c.b16 %v165, %v164
  %182 = vmatprep.subr.bf16.mxu0 0
  %183 = vmatpush1.bf16.msra.mxu0 %v173
  %184 = vmatprep.subr.bf16.mxu0 0
  %185 = vmatpush1.bf16.msra.mxu0 %v172
  %186 = vmatprep.subr.bf16.mxu0 0
  %187 = vmatpush1.bf16.msra.mxu0 %v171
  %188 = vmatprep.subr.bf16.mxu0 0
  %189 = vmatpush1.bf16.msra.mxu0 %v170
  %190 = vmatprep.subr.bf16.mxu0 0
  %191 = vmatpush1.bf16.msra.mxu0 %v169
  %192 = vmatprep.subr.bf16.mxu0 0
  %193 = vmatpush1.bf16.msra.mxu0 %v168
  %194 = vmatprep.subr.bf16.mxu0 0
  %195 = vmatpush1.bf16.msra.mxu0 %v167
  %196 = vmatprep.subr.bf16.mxu0 0
  %197 = vmatpush1.bf16.msra.mxu0 %v166
  %198 = vmatprep.subr.bf16.mxu0 0
  %199 = vmatpush2.bf16.msra.mxu0 0
  %200 = vmatprep.subr.bf16.mxu0 0
  %201 = vmatpush2.bf16.msra.mxu0 0
  %202 = vmatprep.subr.bf16.mxu0 0
  %203 = vmatpush2.bf16.msra.mxu0 0
  %204 = vmatprep.subr.bf16.mxu0 0
  %205 = vmatpush2.bf16.msra.mxu0 0
  %206 = vmatprep.subr.bf16.mxu0 0
  %207 = vmatpush2.bf16.msra.mxu0 0
  %208 = vmatprep.subr.bf16.mxu0 0
  %209 = vmatpush2.bf16.msra.mxu0 0
  %210 = vmatprep.subr.bf16.mxu0 0
  %211 = vmatpush2.bf16.msra.mxu0 0
  %212 = vmatprep.subr.bf16.mxu0 0
  %213 = vmatpush2.bf16.msra.mxu0 0
  %214 = vmatprep.mubr.bf16.mxu0 0
  %215 = vmatmul.mubr.bf16.gmra.mxu0 %v103
  %v216 = vpop.f32.mrf.mxu0
  %v217 = vadd.f32 0.0, %v216
  %v218 = vpop.f32.mrf.mxu0
  %v219 = vpop.f32.mrf.mxu0
  %v220 = vadd.f32 0.0, %v219
  %v221 = vpop.f32.mrf.mxu0
  %222 = vmatprep.mubr.bf16.mxu0 0
  %223 = vmatmul.mubr.bf16.gmra.mxu0 %v104
  %v224 = vpop.f32.mrf.mxu0
  %v225 = vadd.f32 0.0, %v224
  %v226 = vpop.f32.mrf.mxu0
  %v227 = vpop.f32.mrf.mxu0
  %v228 = vadd.f32 0.0, %v227
  %v229 = vpop.f32.mrf.mxu0
  %230 = vdwg.mxu0
  %v231 = vadd.f32 %v114, %v217
  %v232 = vadd.f32 %v115, %v220
  %v233 = vadd.f32 %v116, %v225
  %v234 = vadd.f32 %v117, %v228
  %s235 = scalar_lea.vmem %s1, 64
  %v236 = vld [vmem:[%s235] sm:$0xf]
  %v237 = vld [vmem:[%s235 + $0x4] sm:$0xf]
  %v238 = vld [vmem:[%s235 + $0x8] sm:$0xf]
  %v239 = vld [vmem:[%s235 + $0xc] sm:$0xf]
  %v240 = vld [vmem:[%s235 + $0x10] sm:$0xf]
  %v241 = vld [vmem:[%s235 + $0x14] sm:$0xf]
  %v242 = vld [vmem:[%s235 + $0x18] sm:$0xf]
  %v243 = vld [vmem:[%s235 + $0x1c] sm:$0xf]
  %v244 = vld [vmem:[%s235 + $0x20] sm:$0xf]
  %v245 = vld [vmem:[%s235 + $0x24] sm:$0xf]
  %v246 = vld [vmem:[%s235 + $0x28] sm:$0xf]
  %v247 = vld [vmem:[%s235 + $0x2c] sm:$0xf]
  %v248 = vld [vmem:[%s235 + $0x30] sm:$0xf]
  %v249 = vld [vmem:[%s235 + $0x34] sm:$0xf]
  %v250 = vld [vmem:[%s235 + $0x38] sm:$0xf]
  %v251 = vld [vmem:[%s235 + $0x3c] sm:$0xf]
  %v268 = vunpack.c.l.b16 %v236
  %v269 = vunpack.c.l.b16 %v237
  %v270 = vunpack.c.l.b16 %v238
  %v271 = vunpack.c.l.b16 %v239
  %v272 = vunpack.c.l.b16 %v240
  %v273 = vunpack.c.l.b16 %v241
  %v274 = vunpack.c.l.b16 %v242
  %v275 = vunpack.c.l.b16 %v243
  %v276 = vunpack.c.l.b16 %v244
  %v277 = vunpack.c.l.b16 %v245
  %v278 = vunpack.c.l.b16 %v246
  %v279 = vunpack.c.l.b16 %v247
  %v280 = vunpack.c.l.b16 %v248
  %v281 = vunpack.c.l.b16 %v249
  %v282 = vunpack.c.l.b16 %v250
  %v283 = vunpack.c.l.b16 %v251
  %v284 = vpack.c.b16 %v269, %v268
  %v285 = vpack.c.b16 %v271, %v270
  %v286 = vpack.c.b16 %v273, %v272
  %v287 = vpack.c.b16 %v275, %v274
  %v288 = vpack.c.b16 %v277, %v276
  %v289 = vpack.c.b16 %v279, %v278
  %v290 = vpack.c.b16 %v281, %v280
  %v291 = vpack.c.b16 %v283, %v282
  %300 = vmatprep.subr.bf16.mxu0 0
  %301 = vmatpush1.bf16.msra.mxu0 %v291
  %302 = vmatprep.subr.bf16.mxu0 0
  %303 = vmatpush1.bf16.msra.mxu0 %v290
  %304 = vmatprep.subr.bf16.mxu0 0
  %305 = vmatpush1.bf16.msra.mxu0 %v289
  %306 = vmatprep.subr.bf16.mxu0 0
  %307 = vmatpush1.bf16.msra.mxu0 %v288
  %308 = vmatprep.subr.bf16.mxu0 0
  %309 = vmatpush1.bf16.msra.mxu0 %v287
  %310 = vmatprep.subr.bf16.mxu0 0
  %311 = vmatpush1.bf16.msra.mxu0 %v286
  %312 = vmatprep.subr.bf16.mxu0 0
  %313 = vmatpush1.bf16.msra.mxu0 %v285
  %314 = vmatprep.subr.bf16.mxu0 0
  %315 = vmatpush1.bf16.msra.mxu0 %v284
  %316 = vmatprep.subr.bf16.mxu0 0
  %317 = vmatpush2.bf16.msra.mxu0 0
  %318 = vmatprep.subr.bf16.mxu0 0
  %319 = vmatpush2.bf16.msra.mxu0 0
  %320 = vmatprep.subr.bf16.mxu0 0
  %321 = vmatpush2.bf16.msra.mxu0 0
  %322 = vmatprep.subr.bf16.mxu0 0
  %323 = vmatpush2.bf16.msra.mxu0 0
  %324 = vmatprep.subr.bf16.mxu0 0
  %325 = vmatpush2.bf16.msra.mxu0 0
  %326 = vmatprep.subr.bf16.mxu0 0
  %327 = vmatpush2.bf16.msra.mxu0 0
  %328 = vmatprep.subr.bf16.mxu0 0
  %329 = vmatpush2.bf16.msra.mxu0 0
  %330 = vmatprep.subr.bf16.mxu0 0
  %331 = vmatpush2.bf16.msra.mxu0 0
  %332 = vmatprep.mubr.bf16.mxu0 0
  %333 = vmatmul.mubr.bf16.gmra.mxu0 %v101
  %v334 = vpop.f32.mrf.mxu0
  %v335 = vadd.f32 0.0, %v334
  %v336 = vpop.f32.mrf.mxu0
  %v337 = vpop.f32.mrf.mxu0
  %v338 = vadd.f32 0.0, %v337
  %v339 = vpop.f32.mrf.mxu0
  %340 = vmatprep.mubr.bf16.mxu0 0
  %341 = vmatmul.mubr.bf16.gmra.mxu0 %v102
  %v342 = vpop.f32.mrf.mxu0
  %v343 = vadd.f32 0.0, %v342
  %v344 = vpop.f32.mrf.mxu0
  %v345 = vpop.f32.mrf.mxu0
  %v346 = vadd.f32 0.0, %v345
  %v347 = vpop.f32.mrf.mxu0
  %348 = vdwg.mxu0
  %v349 = vadd.f32 %v231, %v335
  %v350 = vadd.f32 %v232, %v338
  %v351 = vadd.f32 %v233, %v343
  %v352 = vadd.f32 %v234, %v346
  %s353 = scalar_lea.vmem %s1, 128
  %v354 = vld [vmem:[%s353] sm:$0xf]
  %v355 = vld [vmem:[%s353 + $0x4] sm:$0xf]
  %v356 = vld [vmem:[%s353 + $0x8] sm:$0xf]
  %v357 = vld [vmem:[%s353 + $0xc] sm:$0xf]
  %v358 = vld [vmem:[%s353 + $0x10] sm:$0xf]
  %v359 = vld [vmem:[%s353 + $0x14] sm:$0xf]
  %v360 = vld [vmem:[%s353 + $0x18] sm:$0xf]
  %v361 = vld [vmem:[%s353 + $0x1c] sm:$0xf]
  %v362 = vld [vmem:[%s353 + $0x20] sm:$0xf]
  %v363 = vld [vmem:[%s353 + $0x24] sm:$0xf]
  %v364 = vld [vmem:[%s353 + $0x28] sm:$0xf]
  %v365 = vld [vmem:[%s353 + $0x2c] sm:$0xf]
  %v366 = vld [vmem:[%s353 + $0x30] sm:$0xf]
  %v367 = vld [vmem:[%s353 + $0x34] sm:$0xf]
  %v368 = vld [vmem:[%s353 + $0x38] sm:$0xf]
  %v369 = vld [vmem:[%s353 + $0x3c] sm:$0xf]
  %v386 = vunpack.c.l.b16 %v354
  %v387 = vunpack.c.l.b16 %v355
  %v388 = vunpack.c.l.b16 %v356
  %v389 = vunpack.c.l.b16 %v357
  %v390 = vunpack.c.l.b16 %v358
  %v391 = vunpack.c.l.b16 %v359
  %v392 = vunpack.c.l.b16 %v360
  %v393 = vunpack.c.l.b16 %v361
  %v394 = vunpack.c.l.b16 %v362
  %v395 = vunpack.c.l.b16 %v363
  %v396 = vunpack.c.l.b16 %v364
  %v397 = vunpack.c.l.b16 %v365
  %v398 = vunpack.c.l.b16 %v366
  %v399 = vunpack.c.l.b16 %v367
  %v400 = vunpack.c.l.b16 %v368
  %v401 = vunpack.c.l.b16 %v369
  %v402 = vpack.c.b16 %v387, %v386
  %v403 = vpack.c.b16 %v389, %v388
  %v404 = vpack.c.b16 %v391, %v390
  %v405 = vpack.c.b16 %v393, %v392
  %v406 = vpack.c.b16 %v395, %v394
  %v407 = vpack.c.b16 %v397, %v396
  %v408 = vpack.c.b16 %v399, %v398
  %v409 = vpack.c.b16 %v401, %v400
  %418 = vmatprep.subr.bf16.mxu0 0
  %419 = vmatpush1.bf16.msra.mxu0 %v409
  %420 = vmatprep.subr.bf16.mxu0 0
  %421 = vmatpush1.bf16.msra.mxu0 %v408
  %422 = vmatprep.subr.bf16.mxu0 0
  %423 = vmatpush1.bf16.msra.mxu0 %v407
  %424 = vmatprep.subr.bf16.mxu0 0
  %425 = vmatpush1.bf16.msra.mxu0 %v406
  %426 = vmatprep.subr.bf16.mxu0 0
  %427 = vmatpush1.bf16.msra.mxu0 %v405
  %428 = vmatprep.subr.bf16.mxu0 0
  %429 = vmatpush1.bf16.msra.mxu0 %v404
  %430 = vmatprep.subr.bf16.mxu0 0
  %431 = vmatpush1.bf16.msra.mxu0 %v403
  %432 = vmatprep.subr.bf16.mxu0 0
  %433 = vmatpush1.bf16.msra.mxu0 %v402
  %434 = vmatprep.subr.bf16.mxu0 0
  %435 = vmatpush2.bf16.msra.mxu0 0
  %436 = vmatprep.subr.bf16.mxu0 0
  %437 = vmatpush2.bf16.msra.mxu0 0
  %438 = vmatprep.subr.bf16.mxu0 0
  %439 = vmatpush2.bf16.msra.mxu0 0
  %440 = vmatprep.subr.bf16.mxu0 0
  %441 = vmatpush2.bf16.msra.mxu0 0
  %442 = vmatprep.subr.bf16.mxu0 0
  %443 = vmatpush2.bf16.msra.mxu0 0
  %444 = vmatprep.subr.bf16.mxu0 0
  %445 = vmatpush2.bf16.msra.mxu0 0
  %446 = vmatprep.subr.bf16.mxu0 0
  %447 = vmatpush2.bf16.msra.mxu0 0
  %448 = vmatprep.subr.bf16.mxu0 0
  %449 = vmatpush2.bf16.msra.mxu0 0
  %450 = vmatprep.mubr.bf16.mxu0 0
  %451 = vmatmul.mubr.bf16.gmra.mxu0 %v105
  %v452 = vpop.f32.mrf.mxu0
  %v453 = vadd.f32 0.0, %v452
  %v454 = vpop.f32.mrf.mxu0
  %v455 = vpop.f32.mrf.mxu0
  %v456 = vadd.f32 0.0, %v455
  %v457 = vpop.f32.mrf.mxu0
  %458 = vmatprep.mubr.bf16.mxu0 0
  %459 = vmatmul.mubr.bf16.gmra.mxu0 %v106
  %v460 = vpop.f32.mrf.mxu0
  %v461 = vadd.f32 0.0, %v460
  %v462 = vpop.f32.mrf.mxu0
  %v463 = vpop.f32.mrf.mxu0
  %v464 = vadd.f32 0.0, %v463
  %v465 = vpop.f32.mrf.mxu0
  %466 = vdwg.mxu0
  %v467 = vadd.f32 %v349, %v453
  %v468 = vadd.f32 %v350, %v456
  %v469 = vadd.f32 %v351, %v461
  %v470 = vadd.f32 %v352, %v464
  %v471 = vmax.f32 %v467, 0.0
  %v472 = vmax.f32 %v468, 0.0
  %v473 = vmax.f32 %v469, 0.0
  %v474 = vmax.f32 %v470, 0.0
  %475 = vst [vmem:[%s5] sm:$0xff] %v471
  %476 = vst [vmem:[%s5 + $0x8] sm:$0xff] %v472
  %477 = vst [vmem:[%s5 + $0x10] sm:$0xff] %v473
  %478 = vst [vmem:[%s5 + $0x18] sm:$0xff] %v474
  // Predicated region
  $region22: #{res_block_2d.1} parent=0 // pred_check
    _
  $region23: #{res_block_2d.1} parent=0 // pred_check_branch
    %480 = sbr.rel (0) target = $region25
  $region24: #{res_block_2d.1} parent=0 // pred_region
    _
  $region25: #{res_block_2d.1} parent=0 // pred_fallthru
    _
  // Predicated region
  $region26: #{res_block_2d.1} parent=0 // pred_check
    _
  $region27: #{res_block_2d.1} parent=0 // pred_check_branch
    %482 = sbr.rel (0) target = $region29
  $region28: #{res_block_2d.1} parent=0 // pred_region
    _
  $region29: #{res_block_2d.1} parent=0 // pred_fallthru
    _

</llo_original>
